<compile_context>
chip_gen: v7x
topology: tpu7x:2x2x1
jax: 0.10.0
libtpu: 0.0.40
codegen_flags: <defaults>
</compile_context>

<pallas_src>
import numpy as np
import jax
import jax.numpy as jnp
from jax.experimental import pallas as pl
from jax.experimental.pallas import tpu as pltpu

LANE = 128   # vreg lane width
SUB = 8      # vreg sublane count


def _cdiv(a, b):
    return -(-a // b)


def _round_up(a, b):
    return _cdiv(a, b) * b


def _num_tensorcores():
    """2 on multi-TensorCore chips (v7x, v4-style megacore), else 1."""
    try:
        kind = jax.devices()[0].device_kind.lower()
    except Exception:
        return 1
    if ("v7" in kind) or ("v4" in kind):
        return 2
    return 1


# ---------------------------------------------------------------------------
# Pallas kernel: per row-tile partial counts accumulated into the output block
# ---------------------------------------------------------------------------
def _make_wprl_kernel(tile_r, num_tiles, full_rows, rem):
    """Output block layout (3*SUB, LANE) f32:
         rows [ 0: 8) -> count(target == 0)
         rows [ 8:16) -> count(target == 0  and recon != target)
         rows [16:24) -> count(recon != target)
       `full_rows` = number of rows (of 128 lanes) fully covered by real data,
       `rem`       = number of valid lanes in row `full_rows` (0 if none).
    """
    g = tile_r // SUB  # sublane groups per tile (static)

    def kernel(r_ref, t_ref, o_ref):
        s = pl.program_id(0)
        i = pl.program_id(1)

        @pl.when(i == 0)
        def _init():
            o_ref[...] = jnp.zeros_like(o_ref)

        block = s * num_tiles + i          # un-clamped logical block index
        row0 = block * tile_r              # first logical row of this tile

        def accumulate(zero_f, both_f, mism_f):
            o_ref[0 * SUB:1 * SUB, :] += jnp.sum(zero_f.reshape(g, SUB, LANE), axis=0)
            o_ref[1 * SUB:2 * SUB, :] += jnp.sum(both_f.reshape(g, SUB, LANE), axis=0)
            o_ref[2 * SUB:3 * SUB, :] += jnp.sum(mism_f.reshape(g, SUB, LANE), axis=0)

        def compute_masks():
            r = r_ref[...]
            t = t_ref[...]
            zero_b = t == 0
            mism_b = r != t
            zero_f = zero_b.astype(jnp.float32)
            mism_f = mism_b.astype(jnp.float32)
            both_f = jnp.where(zero_b, mism_f, 0.0)
            return zero_f, both_f, mism_f

        # Every element of this tile is real data -> maskless fast path.
        in_bounds = row0 + tile_r <= full_rows

        @pl.when(in_bounds)
        def _fast():
            accumulate(*compute_masks())

        # Boundary / over-covering tile: mask by true element index.
        @pl.when(jnp.logical_not(in_bounds))
        def _ragged():
            zero_f, both_f, mism_f = compute_masks()
            row_ids = row0 + jax.lax.broadcasted_iota(jnp.int32, (tile_r, LANE), 0)
            valid = row_ids < full_rows
            if rem:
                lane_ids = jax.lax.broadcasted_iota(jnp.int32, (tile_r, LANE), 1)
                valid = valid | ((row_ids == full_rows) & (lane_ids < rem))
            zero_f = jnp.where(valid, zero_f, 0.0)
            both_f = jnp.where(valid, both_f, 0.0)
            mism_f = jnp.where(valid, mism_f, 0.0)
            accumulate(zero_f, both_f, mism_f)

    return kernel


# ---------------------------------------------------------------------------
# Wrappers
# ---------------------------------------------------------------------------
def _wprl_partial_sums(recon, target, *, tile_rows=4096, n_split=None):
    assert recon.shape == target.shape, "reconstructed/target shape mismatch"
    n = int(np.prod(recon.shape)) if recon.shape else 1
    assert n > 0

    # Stream inputs at native dtype; only promote when the two dtypes differ.
    if recon.dtype != target.dtype:
        dt = jnp.result_type(recon.dtype, target.dtype)
        recon = recon.astype(dt)
        target = target.astype(dt)
    itemsize = int(jnp.dtype(recon.dtype).itemsize)

    flat_r = recon.reshape(-1)
    flat_t = target.reshape(-1)

    # Minimal alignment to a (rows, 128) layout with rows a multiple of 8.
    # If n % 1024 == 0 (common) this is a pure bitcast -> no extra HBM traffic.
    # Otherwise a single small pad-copy; padded elements are masked in-kernel,
    # so the pad value does not matter.
    n_pad = _round_up(n, SUB * LANE)
    if n_pad != n:
        flat_r = jnp.pad(flat_r, (0, n_pad - n))
        flat_t = jnp.pad(flat_t, (0, n_pad - n))

    rows_total = n_pad // LANE          # multiple of SUB
    full_rows = n // LANE               # rows entirely made of real data
    rem = n % LANE                      # valid lanes in row `full_rows`

    if n_split is None:
        n_split = _num_tensorcores()
    n_split = max(1, min(int(n_split), rows_total // SUB))

    tile_rows = max(SUB, _round_up(int(tile_rows), SUB))
    tile_r = min(tile_rows, _round_up(_cdiv(rows_total, n_split), SUB))
    num_tiles = _cdiv(rows_total, n_split * tile_r)
    total_blocks = _cdiv(rows_total, tile_r)

    r2 = flat_r.reshape(rows_total, LANE)
    t2 = flat_t.reshape(rows_total, LANE)

    # Keep every requested block start in-bounds; duplicate (clamped) blocks are
    # fully masked in the kernel and contribute nothing.
    if n_split * num_tiles == total_blocks:
        def in_idx(s, i):
            return (s * num_tiles + i, 0)
    else:
        last = total_blocks - 1

        def in_idx(s, i):
            return (jnp.minimum(s * num_tiles + i, last), 0)

    # VMEM budget: double-buffered inputs + elementwise f32 temporaries + slack.
    vmem_bytes = (2 * 2 * tile_r * LANE * itemsize
                  + 8 * tile_r * LANE * 4
                  + (2 << 20))
    vmem_bytes = int(min(vmem_bytes, 96 * 1024 * 1024))

    kernel = _make_wprl_kernel(tile_r, num_tiles, full_rows, rem)

    partials = pl.pallas_call(
        kernel,
        out_shape=jax.ShapeDtypeStruct((n_split, 3 * SUB, LANE), jnp.float32),
        grid=(n_split, num_tiles),
        in_specs=[
            pl.BlockSpec((tile_r, LANE), in_idx),
            pl.BlockSpec((tile_r, LANE), in_idx),
        ],
        out_specs=pl.BlockSpec((None, 3 * SUB, LANE), lambda s, i: (s, 0, 0)),
        compiler_params=pltpu.CompilerParams(
            dimension_semantics=("parallel", "arbitrary"),
            vmem_limit_bytes=vmem_bytes),
        cost_estimate=pl.CostEstimate(
            flops=5 * n, transcendentals=0,
            bytes_accessed=2 * n * itemsize),
    )(r2, t2)

    # Finish the tiny (n_split, 24, 128) reduction in XLA with exact int counts.
    p_i32 = partials.astype(jnp.int32)
    n_zero = jnp.sum(p_i32[:, 0 * SUB:1 * SUB, :])
    mism_zero = jnp.sum(p_i32[:, 1 * SUB:2 * SUB, :])
    mism_total = jnp.sum(p_i32[:, 2 * SUB:3 * SUB, :])
    return n_zero, mism_zero, mism_total, n


def weighted_perfect_recovery_loss(reconstructed_image, target_image,
                                   zero_weighting=1, nonzero_weighting=1,
                                   *, tile_rows=4096, n_split=None):
    n_zero, mism_zero, mism_total, n = _wprl_partial_sums(
        reconstructed_image, target_image, tile_rows=tile_rows, n_split=n_split)
    n_nonzero = n - n_zero
    mism_nonzero = mism_total - mism_zero
    zero_loss = jnp.where(
        n_zero > 0,
        mism_zero.astype(jnp.float32) / jnp.maximum(n_zero.astype(jnp.float32), 1.0),
        0.0)
    nonzero_loss = jnp.where(
        n_nonzero > 0,
        mism_nonzero.astype(jnp.float32) / jnp.maximum(n_nonzero.astype(jnp.float32), 1.0),
        0.0)
    return zero_weighting * zero_loss + nonzero_weighting * nonzero_loss


class WeightedPerfectRecoveryLoss:
    """JAX/Pallas re-implementation of the PyTorch forward pass."""

    def __init__(self, zero_weighting=1, nonzero_weighting=1):
        self.zero_weighting = zero_weighting
        self.nonzero_weighting = nonzero_weighting

    def __call__(self, reconstructed_image, target_image):
        return weighted_perfect_recovery_loss(
            reconstructed_image, target_image,
            zero_weighting=self.zero_weighting,
            nonzero_weighting=self.nonzero_weighting)


# ---------------------------------------------------------------------------
# Independent numpy reference (mirrors the PyTorch code)
# ---------------------------------------------------------------------------
def _ref_loss(recon, target, zw=1, nzw=1):
    r = np.asarray(recon)
    t = np.asarray(target)
    zm = (t == 0)
    nzm = ~zm
    zero_n = int(zm.sum())
    nonzero_n = int(nzm.sum())
    zl = zw * (float((r[zm] != t[zm]).sum()) / zero_n) if zero_n else 0.0
    nzl = nzw * (float((r[nzm] != t[nzm]).sum()) / nonzero_n) if nonzero_n else 0.0
    return zl + nzl


# ---------------------------------------------------------------------------
if __name__ == "__main__":
    key = jax.random.PRNGKey(0)

    def make_pair(k, shape, zero_frac=0.6, perturb_frac=0.3):
        k1, k2, k3, k4 = jax.random.split(k, 4)
        vals = jax.random.uniform(k1, shape, jnp.float32, 0.1, 1.0)
        target = jnp.where(jax.random.uniform(k2, shape) < zero_frac, 0.0, vals)
        delta = jax.random.uniform(k4, shape, jnp.float32, 0.1, 0.5)
        recon = jnp.where(jax.random.uniform(k3, shape) < perturb_frac,
                          target + delta, target)
        return recon, target

    cases = []
    # aligned shape (n % 1024 == 0): zero-copy reshape, single tile.
    key, sub = jax.random.split(key)
    r, t = make_pair(sub, (2, 4, 16, 16))
    cases.append((r, t, {}))
    # same data but tiny tiles: exercises multi-step accumulation on the
    # reduction axis and the split/clamp path (n_split=2 on any chip).
    cases.append((r, t, {"tile_rows": 8, "n_split": 2}))
    # ragged shape (n % 128 != 0): exercises row + lane masking.
    key, sub = jax.random.split(key)
    r2, t2 = make_pair(sub, (3, 1, 7, 5))
    cases.append((r2, t2, {}))
    # larger multi-tile ragged case with an uneven split.
    key, sub = jax.random.split(key)
    r3, t3 = make_pair(sub, (5, 1, 32, 32))
    cases.append((r3, t3, {"tile_rows": 8, "n_split": 2}))
    # edge case: target all zero (nonzero branch must return 0).
    cases.append((0.3 * jnp.ones((2, 1, 8, 8), jnp.float32),
                  jnp.zeros((2, 1, 8, 8), jnp.float32), {}))

    for recon, target, kw in cases:
        out = weighted_perfect_recovery_loss(recon, target, 1.0, 2.0, **kw)
        out = jax.block_until_ready(out)
        ref = _ref_loss(recon, target, 1.0, 2.0)
        np.testing.assert_allclose(float(out), ref, rtol=1e-6, atol=1e-6)

    # Also exercise the class wrapper once.
    loss_fn = WeightedPerfectRecoveryLoss(zero_weighting=1.0, nonzero_weighting=2.0)
    out = jax.block_until_ready(loss_fn(cases[0][0], cases[0][1]))
    np.testing.assert_allclose(float(out), _ref_loss(cases[0][0], cases[0][1], 1.0, 2.0),
                               rtol=1e-6, atol=1e-6)

    print("KERNEL_OK")
</pallas_src>

<mosaic_0001>
module attributes {stable_mosaic.version = 11 : i64} {
  func.func @kernel(%arg0: i32, %arg1: i32, %arg2: memref<16x128xf32, #tpu.memory_space<vmem>>, %arg3: memref<16x128xf32, #tpu.memory_space<vmem>>, %arg4: memref<1x24x128xf32, #tpu.memory_space<vmem>>) attributes {dimension_semantics = [#tpu.dimension_semantics<parallel>, #tpu.dimension_semantics<arbitrary>], iteration_bounds = array<i64: 1, 1>, scalar_prefetch = 0 : i64, scratch_operands = 0 : i64, tpu.core_type = #tpu.core_type<tc>, window_params = [{transform_indices = @transform_0, window_bounds = array<i64: 16, 128>}, {transform_indices = @transform_1, window_bounds = array<i64: 16, 128>}, {transform_indices = @transform_2, window_bounds = array<i64: 1, 24, 128>}]} {
    %c0_i32 = arith.constant 0 : i32
    %0 = arith.cmpi eq, %arg1, %c0_i32 : i32
    %1 = arith.extui %0 : i1 to i32
    %c0_i32_0 = arith.constant 0 : i32
    %2 = arith.cmpi ne, %1, %c0_i32_0 : i32
    scf.if %2 {
      %cst = arith.constant 0.000000e+00 : f32
      %13 = vector.broadcast %cst : f32 to vector<24x128xf32>
      %c0 = arith.constant 0 : index
      %c0_5 = arith.constant 0 : index
      %c0_6 = arith.constant 0 : index
      %14 = vector.load %arg4[%c0, %c0_5, %c0_6] : memref<1x24x128xf32, #tpu.memory_space<vmem>>, vector<1x24x128xf32>
      %15 = vector.shape_cast %14 : vector<1x24x128xf32> to vector<24x128xf32>
      %16 = vector.shape_cast %13 : vector<24x128xf32> to vector<1x24x128xf32>
      tpu.vector_store %arg4[%c0, %c0_5, %c0_6], %16 {strides = array<i32>} : memref<1x24x128xf32, #tpu.memory_space<vmem>>, vector<1x24x128xf32>,
    } else {
    }
    %c1_i32 = arith.constant 1 : i32
    %3 = arith.muli %arg0, %c1_i32 : i32
    %4 = arith.addi %3, %arg1 : i32
    %c16_i32 = arith.constant 16 : i32
    %5 = arith.muli %4, %c16_i32 : i32
    %c16_i32_1 = arith.constant 16 : i32
    %6 = arith.addi %5, %c16_i32_1 : i32
    %c16_i32_2 = arith.constant 16 : i32
    %7 = arith.cmpi sle, %6, %c16_i32_2 : i32
    %8 = arith.extui %7 : i1 to i32
    %c0_i32_3 = arith.constant 0 : i32
    %9 = arith.cmpi ne, %8, %c0_i32_3 : i32
    scf.if %9 {
      %c0 = arith.constant 0 : index
      %c0_5 = arith.constant 0 : index
      %13 = vector.load %arg2[%c0, %c0_5] : memref<16x128xf32, #tpu.memory_space<vmem>>, vector<16x128xf32>
      %c0_6 = arith.constant 0 : index
      %c0_7 = arith.constant 0 : index
      %14 = vector.load %arg3[%c0_6, %c0_7] : memref<16x128xf32, #tpu.memory_space<vmem>>, vector<16x128xf32>
      %cst = arith.constant 0.000000e+00 : f32
      %15 = vector.broadcast %cst : f32 to vector<16x128xf32>
      %16 = arith.cmpf oeq, %14, %15 : vector<16x128xf32>
      %17 = arith.cmpf one, %13, %14 : vector<16x128xf32>
      %18 = arith.extui %16 : vector<16x128xi1> to vector<16x128xi32>
      %19 = arith.sitofp %18 : vector<16x128xi32> to vector<16x128xf32>
      %20 = arith.extui %17 : vector<16x128xi1> to vector<16x128xi32>
      %21 = arith.sitofp %20 : vector<16x128xi32> to vector<16x128xf32>
      %cst_8 = arith.constant 0.000000e+00 : f32
      %22 = vector.broadcast %cst_8 : f32 to vector<16x128xf32>
      %23 = arith.select %16, %21, %22 : vector<16x128xi1>, vector<16x128xf32>
      %c0_9 = arith.constant 0 : index
      %c0_10 = arith.constant 0 : index
      %c0_11 = arith.constant 0 : index
      %24 = vector.load %arg4[%c0_9, %c0_10, %c0_11] : memref<1x24x128xf32, #tpu.memory_space<vmem>>, vector<1x8x128xf32>
      %25 = vector.shape_cast %24 : vector<1x8x128xf32> to vector<8x128xf32>
      %26 = vector.shape_cast %19 : vector<16x128xf32> to vector<2x8x128xf32>
      %cst_12 = arith.constant dense<0.000000e+00> : vector<8x128xf32>
      %27 = vector.multi_reduction <add>, %26, %cst_12 [0] : vector<2x8x128xf32> to vector<8x128xf32>
      %28 = arith.addf %25, %27 : vector<8x128xf32>
      %c0_13 = arith.constant 0 : index
      %c0_14 = arith.constant 0 : index
      %c0_15 = arith.constant 0 : index
      %29 = vector.load %arg4[%c0_13, %c0_14, %c0_15] : memref<1x24x128xf32, #tpu.memory_space<vmem>>, vector<1x8x128xf32>
      %30 = vector.shape_cast %29 : vector<1x8x128xf32> to vector<8x128xf32>
      %31 = vector.shape_cast %28 : vector<8x128xf32> to vector<1x8x128xf32>
      tpu.vector_store %arg4[%c0_13, %c0_14, %c0_15], %31 {strides = array<i32>} : memref<1x24x128xf32, #tpu.memory_space<vmem>>, vector<1x8x128xf32>,
      %c0_16 = arith.constant 0 : index
      %c8 = arith.constant 8 : index
      %c0_17 = arith.constant 0 : index
      %32 = vector.load %arg4[%c0_16, %c8, %c0_17] : memref<1x24x128xf32, #tpu.memory_space<vmem>>, vector<1x8x128xf32>
      %33 = vector.shape_cast %32 : vector<1x8x128xf32> to vector<8x128xf32>
      %34 = vector.shape_cast %23 : vector<16x128xf32> to vector<2x8x128xf32>
      %cst_18 = arith.constant dense<0.000000e+00> : vector<8x128xf32>
      %35 = vector.multi_reduction <add>, %34, %cst_18 [0] : vector<2x8x128xf32> to vector<8x128xf32>
      %36 = arith.addf %33, %35 : vector<8x128xf32>
      %c0_19 = arith.constant 0 : index
      %c8_20 = arith.constant 8 : index
      %c0_21 = arith.constant 0 : index
      %37 = vector.load %arg4[%c0_19, %c8_20, %c0_21] : memref<1x24x128xf32, #tpu.memory_space<vmem>>, vector<1x8x128xf32>
      %38 = vector.shape_cast %37 : vector<1x8x128xf32> to vector<8x128xf32>
      %39 = vector.shape_cast %36 : vector<8x128xf32> to vector<1x8x128xf32>
      tpu.vector_store %arg4[%c0_19, %c8_20, %c0_21], %39 {strides = array<i32>} : memref<1x24x128xf32, #tpu.memory_space<vmem>>, vector<1x8x128xf32>,
      %c0_22 = arith.constant 0 : index
      %c16 = arith.constant 16 : index
      %c0_23 = arith.constant 0 : index
      %40 = vector.load %arg4[%c0_22, %c16, %c0_23] : memref<1x24x128xf32, #tpu.memory_space<vmem>>, vector<1x8x128xf32>
      %41 = vector.shape_cast %40 : vector<1x8x128xf32> to vector<8x128xf32>
      %42 = vector.shape_cast %21 : vector<16x128xf32> to vector<2x8x128xf32>
      %cst_24 = arith.constant dense<0.000000e+00> : vector<8x128xf32>
      %43 = vector.multi_reduction <add>, %42, %cst_24 [0] : vector<2x8x128xf32> to vector<8x128xf32>
      %44 = arith.addf %41, %43 : vector<8x128xf32>
      %c0_25 = arith.constant 0 : index
      %c16_26 = arith.constant 16 : index
      %c0_27 = arith.constant 0 : index
      %45 = vector.load %arg4[%c0_25, %c16_26, %c0_27] : memref<1x24x128xf32, #tpu.memory_space<vmem>>, vector<1x8x128xf32>
      %46 = vector.shape_cast %45 : vector<1x8x128xf32> to vector<8x128xf32>
      %47 = vector.shape_cast %44 : vector<8x128xf32> to vector<1x8x128xf32>
      tpu.vector_store %arg4[%c0_25, %c16_26, %c0_27], %47 {strides = array<i32>} : memref<1x24x128xf32, #tpu.memory_space<vmem>>, vector<1x8x128xf32>,
    } else {
    }
    %true = arith.constant true
    %10 = arith.xori %7, %true : i1
    %11 = arith.extui %10 : i1 to i32
    %c0_i32_4 = arith.constant 0 : i32
    %12 = arith.cmpi ne, %11, %c0_i32_4 : i32
    scf.if %12 {
      %c0 = arith.constant 0 : index
      %c0_5 = arith.constant 0 : index
      %13 = vector.load %arg2[%c0, %c0_5] : memref<16x128xf32, #tpu.memory_space<vmem>>, vector<16x128xf32>
      %c0_6 = arith.constant 0 : index
      %c0_7 = arith.constant 0 : index
      %14 = vector.load %arg3[%c0_6, %c0_7] : memref<16x128xf32, #tpu.memory_space<vmem>>, vector<16x128xf32>
      %cst = arith.constant 0.000000e+00 : f32
      %15 = vector.broadcast %cst : f32 to vector<16x128xf32>
      %16 = arith.cmpf oeq, %14, %15 : vector<16x128xf32>
      %17 = arith.cmpf one, %13, %14 : vector<16x128xf32>
      %18 = arith.extui %16 : vector<16x128xi1> to vector<16x128xi32>
      %19 = arith.sitofp %18 : vector<16x128xi32> to vector<16x128xf32>
      %20 = arith.extui %17 : vector<16x128xi1> to vector<16x128xi32>
      %21 = arith.sitofp %20 : vector<16x128xi32> to vector<16x128xf32>
      %cst_8 = arith.constant 0.000000e+00 : f32
      %22 = vector.broadcast %cst_8 : f32 to vector<16x128xf32>
      %23 = arith.select %16, %21, %22 : vector<16x128xi1>, vector<16x128xf32>
      %24 = tpu.iota {dimensions = array<i32: 0>} : vector<16x128xi32>
      %25 = vector.broadcast %5 : i32 to vector<16x128xi32>
      %26 = arith.addi %25, %24 : vector<16x128xi32>
      %c16_i32_9 = arith.constant 16 : i32
      %27 = vector.broadcast %c16_i32_9 : i32 to vector<16x128xi32>
      %28 = arith.cmpi slt, %26, %27 : vector<16x128xi32>
      %cst_10 = arith.constant 0.000000e+00 : f32
      %29 = vector.broadcast %cst_10 : f32 to vector<16x128xf32>
      %30 = arith.select %28, %19, %29 : vector<16x128xi1>, vector<16x128xf32>
      %cst_11 = arith.constant 0.000000e+00 : f32
      %31 = vector.broadcast %cst_11 : f32 to vector<16x128xf32>
      %32 = arith.select %28, %23, %31 : vector<16x128xi1>, vector<16x128xf32>
      %cst_12 = arith.constant 0.000000e+00 : f32
      %33 = vector.broadcast %cst_12 : f32 to vector<16x128xf32>
      %34 = arith.select %28, %21, %33 : vector<16x128xi1>, vector<16x128xf32>
      %c0_13 = arith.constant 0 : index
      %c0_14 = arith.constant 0 : index
      %c0_15 = arith.constant 0 : index
      %35 = vector.load %arg4[%c0_13, %c0_14, %c0_15] : memref<1x24x128xf32, #tpu.memory_space<vmem>>, vector<1x8x128xf32>
      %36 = vector.shape_cast %35 : vector<1x8x128xf32> to vector<8x128xf32>
      %37 = vector.shape_cast %30 : vector<16x128xf32> to vector<2x8x128xf32>
      %cst_16 = arith.constant dense<0.000000e+00> : vector<8x128xf32>
      %38 = vector.multi_reduction <add>, %37, %cst_16 [0] : vector<2x8x128xf32> to vector<8x128xf32>
      %39 = arith.addf %36, %38 : vector<8x128xf32>
      %c0_17 = arith.constant 0 : index
      %c0_18 = arith.constant 0 : index
      %c0_19 = arith.constant 0 : index
      %40 = vector.load %arg4[%c0_17, %c0_18, %c0_19] : memref<1x24x128xf32, #tpu.memory_space<vmem>>, vector<1x8x128xf32>
      %41 = vector.shape_cast %40 : vector<1x8x128xf32> to vector<8x128xf32>
      %42 = vector.shape_cast %39 : vector<8x128xf32> to vector<1x8x128xf32>
      tpu.vector_store %arg4[%c0_17, %c0_18, %c0_19], %42 {strides = array<i32>} : memref<1x24x128xf32, #tpu.memory_space<vmem>>, vector<1x8x128xf32>,
      %c0_20 = arith.constant 0 : index
      %c8 = arith.constant 8 : index
      %c0_21 = arith.constant 0 : index
      %43 = vector.load %arg4[%c0_20, %c8, %c0_21] : memref<1x24x128xf32, #tpu.memory_space<vmem>>, vector<1x8x128xf32>
      %44 = vector.shape_cast %43 : vector<1x8x128xf32> to vector<8x128xf32>
      %45 = vector.shape_cast %32 : vector<16x128xf32> to vector<2x8x128xf32>
      %cst_22 = arith.constant dense<0.000000e+00> : vector<8x128xf32>
      %46 = vector.multi_reduction <add>, %45, %cst_22 [0] : vector<2x8x128xf32> to vector<8x128xf32>
      %47 = arith.addf %44, %46 : vector<8x128xf32>
      %c0_23 = arith.constant 0 : index
      %c8_24 = arith.constant 8 : index
      %c0_25 = arith.constant 0 : index
      %48 = vector.load %arg4[%c0_23, %c8_24, %c0_25] : memref<1x24x128xf32, #tpu.memory_space<vmem>>, vector<1x8x128xf32>
      %49 = vector.shape_cast %48 : vector<1x8x128xf32> to vector<8x128xf32>
      %50 = vector.shape_cast %47 : vector<8x128xf32> to vector<1x8x128xf32>
      tpu.vector_store %arg4[%c0_23, %c8_24, %c0_25], %50 {strides = array<i32>} : memref<1x24x128xf32, #tpu.memory_space<vmem>>, vector<1x8x128xf32>,
      %c0_26 = arith.constant 0 : index
      %c16 = arith.constant 16 : index
      %c0_27 = arith.constant 0 : index
      %51 = vector.load %arg4[%c0_26, %c16, %c0_27] : memref<1x24x128xf32, #tpu.memory_space<vmem>>, vector<1x8x128xf32>
      %52 = vector.shape_cast %51 : vector<1x8x128xf32> to vector<8x128xf32>
      %53 = vector.shape_cast %34 : vector<16x128xf32> to vector<2x8x128xf32>
      %cst_28 = arith.constant dense<0.000000e+00> : vector<8x128xf32>
      %54 = vector.multi_reduction <add>, %53, %cst_28 [0] : vector<2x8x128xf32> to vector<8x128xf32>
      %55 = arith.addf %52, %54 : vector<8x128xf32>
      %c0_29 = arith.constant 0 : index
      %c16_30 = arith.constant 16 : index
      %c0_31 = arith.constant 0 : index
      %56 = vector.load %arg4[%c0_29, %c16_30, %c0_31] : memref<1x24x128xf32, #tpu.memory_space<vmem>>, vector<1x8x128xf32>
      %57 = vector.shape_cast %56 : vector<1x8x128xf32> to vector<8x128xf32>
      %58 = vector.shape_cast %55 : vector<8x128xf32> to vector<1x8x128xf32>
      tpu.vector_store %arg4[%c0_29, %c16_30, %c0_31], %58 {strides = array<i32>} : memref<1x24x128xf32, #tpu.memory_space<vmem>>, vector<1x8x128xf32>,
    } else {
    }
    return
  }
  func.func @transform_0(%arg0: i32, %arg1: i32) -> (i32, i32) {
    %c1_i32 = arith.constant 1 : i32
    %0 = arith.muli %arg0, %c1_i32 : i32
    %1 = arith.addi %0, %arg1 : i32
    %c0_i32 = arith.constant 0 : i32
    %c0_i32_0 = arith.constant 0 : i32
    return %1, %c0_i32 : i32, i32
  }
  func.func @transform_1(%arg0: i32, %arg1: i32) -> (i32, i32) {
    %c1_i32 = arith.constant 1 : i32
    %0 = arith.muli %arg0, %c1_i32 : i32
    %1 = arith.addi %0, %arg1 : i32
    %c0_i32 = arith.constant 0 : i32
    %c0_i32_0 = arith.constant 0 : i32
    return %1, %c0_i32 : i32, i32
  }
  func.func @transform_2(%arg0: i32, %arg1: i32) -> (i32, i32, i32) {
    %c0_i32 = arith.constant 0 : i32
    %c0_i32_0 = arith.constant 0 : i32
    %c0_i32_1 = arith.constant 0 : i32
    return %arg0, %c0_i32, %c0_i32_0 : i32, i32, i32
  }
}

</mosaic_0001>

<llo_original>
// kernel: tpu_custom_call.1
$region0: #{tpu_custom_call.1}
  #allocation0 [shape = 'u32[]', space=smem, size = 0x4, offset = 0x4, fixed_abs, tag = 'smem constant byte address 0x4 - core index']
  #allocation1 [shape = 'u32[144,128]{1,0:T(1,128)}', space=vmem, size = 0x12000, scoped, tag = 'internal scratch']
  %s0 = inlined_call_operand.hbm [shape: f32[16,128], index: 0, kind: input, shape index: {}]
  %s1 = inlined_call_operand.hbm [shape: f32[16,128], index: 1, kind: input, shape index: {}]
  %s2 = inlined_call_operand.hbm [shape: f32[1,24,128], index: 2, kind: output, shape index: {}]
  %s3 = sld [smem:[#allocation0]]
  $region38: #{tpu_custom_call.1} parent=0
    _
  %s5 = ssub.s32 1, %s3
  %s6 = scalar_select 0, %s5, %s3
  $region1: #{tpu_custom_call.1} parent=0
    #allocation2 [shape = 'u8[8192]{0}', space=vmem, size = 0x2000, scoped, tag = 'input window, operand 0, single buffered']
    #allocation3 [shape = 's32[1]{0}', space=sflag, size = 0x4, scoped, tag = 'scoped memory for tpu_custom_call.1']
    #allocation4 [shape = 's32[1]{0}', space=sflag, size = 0x4, scoped, tag = 'scoped memory for tpu_custom_call.1']
    #allocation5 [shape = 'u8[8192]{0}', space=vmem, size = 0x2000, scoped, tag = 'input window, operand 1, single buffered']
    #allocation6 [shape = 's32[1]{0}', space=sflag, size = 0x4, scoped, tag = 'scoped memory for tpu_custom_call.1']
    #allocation7 [shape = 'u8[12288]{0}', space=vmem, size = 0x3000, scoped, tag = 'output window, operand 0, single buffered']
    %7 = vsyncpa [#allocation3], 0
    %8 = vsyncpa [#allocation6], 0
    %9 = vsyncpa [#allocation4], 0
    // Predicated region
    $region2: #{tpu_custom_call.1} parent=1 // pred_check
      _
    $region3: #{tpu_custom_call.1} parent=1 // pred_check_branch
      %11 = sbr.rel (0) target = $region5
    $region4: #{tpu_custom_call.1} parent=1 // pred_region
      %s12 = sadd.s32 0, 0
      %s13 = smul.u32 2, %s12
      %s15 = ssub.s32 256, 256
      %16 = vsyncadd [#allocation3], %s15
      %s17 = smul.addr %s13, 128
      %s18 = scalar_lea.hbm %s0, %s17
      %s19 = sshll.u32 [#allocation2], 4
      %s20 = int_to_ptr.vmem [resolvable:$true] %s19
      %25 = dma.hbm_to_vmem [thread:$0]  %s18, 256, %s20, [#allocation3], 128, 128, 8
    $region5: #{tpu_custom_call.1} parent=1 // pred_fallthru
      _
    // Predicated region
    $region6: #{tpu_custom_call.1} parent=1 // pred_check
      _
    $region7: #{tpu_custom_call.1} parent=1 // pred_check_branch
      %27 = sbr.rel (0) target = $region9
    $region8: #{tpu_custom_call.1} parent=1 // pred_region
      %s28 = sadd.s32 0, 0
      %s29 = smul.u32 2, %s28
      %s31 = ssub.s32 256, 256
      %32 = vsyncadd [#allocation6], %s31
      %s33 = smul.addr %s29, 128
      %s34 = scalar_lea.hbm %s1, %s33
      %s35 = sshll.u32 [#allocation5], 4
      %s36 = int_to_ptr.vmem [resolvable:$true] %s35
      %41 = dma.hbm_to_vmem [thread:$0]  %s34, 256, %s36, [#allocation6], 128, 128, 8
    $region9: #{tpu_custom_call.1} parent=1 // pred_fallthru
      _
    // Predicated region
    $region10: #{tpu_custom_call.1} parent=1 // pred_check
      _
    $region11: #{tpu_custom_call.1} parent=1 // pred_check_branch
      %43 = sbr.rel (0) target = $region13
    $region12: #{tpu_custom_call.1} parent=1 // pred_region
      %44 = dma.done [#allocation3], 256
    $region13: #{tpu_custom_call.1} parent=1 // pred_fallthru
      _
    // Predicated region
    $region14: #{tpu_custom_call.1} parent=1 // pred_check
      _
    $region15: #{tpu_custom_call.1} parent=1 // pred_check_branch
      %46 = sbr.rel (0) target = $region17
    $region16: #{tpu_custom_call.1} parent=1 // pred_region
      %47 = dma.done [#allocation6], 256
    $region17: #{tpu_custom_call.1} parent=1 // pred_fallthru
      _
    %s48 = sadd.s32 0, 0
    %s49 = smul.u32 2, %s48
    %s50 = sadd.s32 0, 0
    %s51 = smul.u32 2, %s50
    %p52 = scmp.eq.s32.totalorder 0, 0
    // Predicated region
    $region18: #{tpu_custom_call.1} parent=1 // pred_check
      %p53 = pneg %p52
    $region19: #{tpu_custom_call.1} parent=1 // pred_check_branch
      %55 = sbr.rel (%p53) target = $region21
    $region20: #{tpu_custom_call.1} parent=1 // pred_region
      %56 = vst [vmem:[#allocation7] sm:$0xff] 0.0
      %57 = vst [vmem:[#allocation7 + $0x8] sm:$0xff] 0.0
      %58 = vst [vmem:[#allocation7 + $0x10] sm:$0xff] 0.0
    $region21: #{tpu_custom_call.1} parent=1 // pred_fallthru
      _
    %s59 = sadd.s32 0, 0
    %s60 = smul.u32 %s59, 16
    %s61 = sadd.s32 %s60, 16
    %p62 = scmp.le.s32.totalorder %s61, 16
    // Predicated region
    $region22: #{tpu_custom_call.1} parent=1 // pred_check
      %p63 = pneg %p62
    $region23: #{tpu_custom_call.1} parent=1 // pred_check_branch
      %65 = sbr.rel (%p63) target = $region25
    $region24: #{tpu_custom_call.1} parent=1 // pred_region
      %v66 = vld [vmem:[#allocation2] sm:$0xff]
      %v67 = vld [vmem:[#allocation2 + $0x8] sm:$0xff]
      %v68 = vld [vmem:[#allocation5] sm:$0xff]
      %v69 = vld [vmem:[#allocation5 + $0x8] sm:$0xff]
      %vm70 = vcmp.eq.f32.partialorder %v68, 0.0
      %vm71 = vcmp.eq.f32.partialorder %v69, 0.0
      %vm72 = vcmp.ne.f32.partialorder %v66, %v68
      %vm73 = vcmp.ne.f32.partialorder %v67, %v69
      %v74 = vsel %vm70, 1, 0
      %v75 = vsel %vm71, 1, 0
      %v76 = vcvt.s32.f32 %v74
      %v77 = vcvt.s32.f32 %v75
      %v78 = vsel %vm72, 1, 0
      %v79 = vsel %vm73, 1, 0
      %v80 = vcvt.s32.f32 %v78
      %v81 = vcvt.s32.f32 %v79
      %v82 = vsel %vm70, %v80, 0.0
      %v83 = vsel %vm71, %v81, 0.0
      %v84 = vld [vmem:[#allocation7] sm:$0xff]
      %v85 = vadd.f32 %v76, %v77
      %v86 = vadd.f32 %v84, %v85
      %87 = vst [vmem:[#allocation7] sm:$0xff] %v86
      %v88 = vld [vmem:[#allocation7 + $0x8] sm:$0xff]
      %v89 = vadd.f32 %v82, %v83
      %v90 = vadd.f32 %v88, %v89
      %91 = vst [vmem:[#allocation7 + $0x8] sm:$0xff] %v90
      %v92 = vld [vmem:[#allocation7 + $0x10] sm:$0xff]
      %v93 = vadd.f32 %v80, %v81
      %v94 = vadd.f32 %v92, %v93
      %95 = vst [vmem:[#allocation7 + $0x10] sm:$0xff] %v94
    $region25: #{tpu_custom_call.1} parent=1 // pred_fallthru
      _
    %p96 = scmp.gt.s32.totalorder %s61, 16
    // Predicated region
    $region26: #{tpu_custom_call.1} parent=1 // pred_check
      %p97 = pneg %p96
    $region27: #{tpu_custom_call.1} parent=1 // pred_check_branch
      %99 = sbr.rel (%p97) target = $region29
    $region28: #{tpu_custom_call.1} parent=1 // pred_region
      %v100 = vld [vmem:[#allocation2] sm:$0xff]
      %v101 = vld [vmem:[#allocation2 + $0x8] sm:$0xff]
      %v102 = vld [vmem:[#allocation5] sm:$0xff]
      %v103 = vld [vmem:[#allocation5 + $0x8] sm:$0xff]
      %vm104 = vcmp.eq.f32.partialorder %v102, 0.0
      %vm105 = vcmp.eq.f32.partialorder %v103, 0.0
      %vm106 = vcmp.ne.f32.partialorder %v100, %v102
      %vm107 = vcmp.ne.f32.partialorder %v101, %v103
      %v108 = vsel %vm104, 1, 0
      %v109 = vsel %vm105, 1, 0
      %v110 = vcvt.s32.f32 %v108
      %v111 = vcvt.s32.f32 %v109
      %v112 = vsel %vm106, 1, 0
      %v113 = vsel %vm107, 1, 0
      %v114 = vcvt.s32.f32 %v112
      %v115 = vcvt.s32.f32 %v113
      %v116 = vsel %vm104, %v114, 0.0
      %v117 = vsel %vm105, %v115, 0.0
      %v118 = vlaneseq
      %v119 = vshrl.u32 %v118, 7
      %v120 = vadd.s32 %v119, 8
      %v121 = vstv %s60
      %v122 = vadd.s32 %v121, %v119
      %v123 = vadd.s32 %v121, %v120
      %vm124 = vcmp.lt.s32.totalorder %v122, 16
      %vm125 = vcmp.lt.s32.totalorder %v123, 16
      %v126 = vsel %vm124, %v110, 0.0
      %v127 = vsel %vm125, %v111, 0.0
      %v128 = vsel %vm124, %v116, 0.0
      %v129 = vsel %vm125, %v117, 0.0
      %v130 = vsel %vm124, %v114, 0.0
      %v131 = vsel %vm125, %v115, 0.0
      %v132 = vld [vmem:[#allocation7] sm:$0xff]
      %v133 = vadd.f32 %v126, %v127
      %v134 = vadd.f32 %v132, %v133
      %135 = vst [vmem:[#allocation7] sm:$0xff] %v134
      %v136 = vld [vmem:[#allocation7 + $0x8] sm:$0xff]
      %v137 = vadd.f32 %v128, %v129
      %v138 = vadd.f32 %v136, %v137
      %139 = vst [vmem:[#allocation7 + $0x8] sm:$0xff] %v138
      %v140 = vld [vmem:[#allocation7 + $0x10] sm:$0xff]
      %v141 = vadd.f32 %v130, %v131
      %v142 = vadd.f32 %v140, %v141
      %143 = vst [vmem:[#allocation7 + $0x10] sm:$0xff] %v142
    $region29: #{tpu_custom_call.1} parent=1 // pred_fallthru
      _
    // Predicated region
    $region30: #{tpu_custom_call.1} parent=1 // pred_check
      _
    $region31: #{tpu_custom_call.1} parent=1 // pred_check_branch
      %145 = sbr.rel (0) target = $region33
    $region32: #{tpu_custom_call.1} parent=1 // pred_region
      %s147 = ssub.s32 384, 384
      %148 = vsyncadd [#allocation4], %s147
      %s149 = sshll.u32 [#allocation7], 4
      %s150 = int_to_ptr.vmem [resolvable:$true] %s149
      %155 = dma.vmem_to_hbm [thread:$0]  %s150, 384, %s2, [#allocation4], 128, 128, 8
    $region33: #{tpu_custom_call.1} parent=1 // pred_fallthru
      _
    // Predicated region
    $region34: #{tpu_custom_call.1} parent=1 // pred_check
      _
    $region35: #{tpu_custom_call.1} parent=1 // pred_check_branch
      %157 = sbr.rel (0) target = $region37
    $region36: #{tpu_custom_call.1} parent=1 // pred_region
      %158 = dma.done [#allocation4], 384
    $region37: #{tpu_custom_call.1} parent=1 // pred_fallthru
      _
    %159 = vsyncpa [#allocation3], 1
    %160 = vsyncpa [#allocation6], 1
    %161 = vsyncpa [#allocation4], 1

</llo_original>
